<compile_context>
chip_gen: v7x
topology: tpu7x:2x2x1
jax: 0.10.0
libtpu: 0.0.40
codegen_flags: <defaults>
</compile_context>

<pallas_src>
import math

import jax
import jax.numpy as jnp
from jax.experimental import pallas as pl
from jax.experimental.pallas import tpu as pltpu


_LANE = 128
_TARGET_BLOCK_BYTES = 4 * 1024 * 1024   # large blocks amortize ~0.35 us/step grid overhead
_MIN_BLOCK_BYTES = 256 * 1024           # floor when shrinking blocks to feed 2 TCs (v7x)
_VMEM_LIMIT_BYTES = 48 * 1024 * 1024    # explicit scoped-VMEM budget (<= v7x physical 64 MiB)


def make_positional_encoding(d_model: int, max_len: int = 640) -> jnp.ndarray:
    """Replicates the PyTorch __init__ buffer construction (float32)."""
    position = jnp.arange(0, max_len, dtype=jnp.float32)[:, None]            # (max_len, 1)
    div_term = jnp.exp(
        jnp.arange(0, d_model, 2, dtype=jnp.float32) * (-math.log(10000.0) / d_model)
    )                                                                         # (ceil(D/2),)
    angles = position * div_term                                              # (max_len, ceil(D/2))
    pe = jnp.zeros((max_len, d_model), dtype=jnp.float32)
    pe = pe.at[:, 0::2].set(jnp.sin(angles))
    n_cos = pe[:, 1::2].shape[1]                                              # floor(D/2)
    pe = pe.at[:, 1::2].set(jnp.cos(angles)[:, :n_cos])
    return pe


def prepare_pe(pe: jnp.ndarray, seq_len: int, dtype) -> jnp.ndarray:
    """Slice/cast/reshape the table once -> (1, T, D).

    Hoist this into parameter setup and cache per (seq_len, dtype) for high-QPS inference;
    scaled_positional_encoding accepts the prepared (1, T, D) array directly.
    """
    return pe[:seq_len, :].astype(dtype)[None, :, :]


def _add_pe_kernel(x_ref, pe_ref, o_ref):
    # x_ref/o_ref: (tb, tt, td) block;  pe_ref: (1, tt, td) -> broadcast over the batch tile.
    o_ref[...] = x_ref[...] + pe_ref[...]


def _choose_tiles(B: int, T: int, D: int, itemsize: int):
    """Pick (tb, tt, td) tiles for the (B, T, D) elementwise add.

    td (lane):    full D when D <= 128, else a multiple of 128 (ragged edge block is masked).
    tt (sublane): full T when it fits the byte budget, else a multiple of the dtype's
                  sublane packing granularity (8 for 4-byte, 16 for 2-byte, 32 for 1-byte).
    tb (batch):   leading dim -> no layout constraint; sized to reach the byte budget.
    """
    sub = max(8, 32 // itemsize)
    total_bytes = B * T * D * itemsize

    # Shrink the per-block target for mid-sized inputs so the parallel grid has >= 2
    # iterations (keeps both v7x TensorCores busy); tiny inputs stay single-block.
    if total_bytes >= 2 * _MIN_BLOCK_BYTES:
        target = max(_MIN_BLOCK_BYTES, min(_TARGET_BLOCK_BYTES, total_bytes // 2))
    else:
        target = _TARGET_BLOCK_BYTES

    # Lane (last-dim) tile.
    if D <= _LANE:
        td = D                                              # full extent -> always legal
    else:
        cap = max(_LANE, (target // (sub * itemsize)) // _LANE * _LANE)
        td = min((D // _LANE) * _LANE, cap)                 # multiple of 128, <= D

    # Sublane (second-last-dim) tile.
    rows_budget = max(1, target // (td * itemsize))
    if T <= max(sub, rows_budget):
        tt = T                                              # full extent -> always legal
    else:
        tt = max(sub, (rows_budget // sub) * sub)           # multiple of sublane granularity

    # Batch tile (leading dim).
    per_batch_bytes = tt * td * itemsize
    tb = max(1, min(B, target // per_batch_bytes))
    return tb, tt, td


def scaled_positional_encoding(x: jnp.ndarray, pe: jnp.ndarray) -> jnp.ndarray:
    """x: (B, T, D).  pe: (max_len, D) table, or a pre-prepared (1, T, D) slice.

    Returns x + pe[:T][None, :, :] (identical to the PyTorch module's forward).
    """
    B, T, D = x.shape
    dtype = x.dtype

    if pe.ndim == 2:
        if T > pe.shape[0]:
            raise ValueError(f"sequence length {T} exceeds positional table max_len {pe.shape[0]}")
        if pe.shape[1] != D:
            raise ValueError(f"d_model mismatch: x has {D}, pe has {pe.shape[1]}")
        pe3 = prepare_pe(pe, T, dtype)                      # prefer caching this in the caller
    else:
        if pe.shape != (1, T, D):
            raise ValueError(f"prepared pe must have shape (1, {T}, {D}); got {pe.shape}")
        pe3 = pe.astype(dtype)

    itemsize = jnp.dtype(dtype).itemsize
    tb, tt, td = _choose_tiles(B, T, D, itemsize)
    # Batch is the innermost (fastest) grid axis so pe's block index stays constant across
    # consecutive steps -> its DMA is elided and it is fetched once per (t, d) tile.
    grid = (pl.cdiv(T, tt), pl.cdiv(D, td), pl.cdiv(B, tb))

    out = pl.pallas_call(
        _add_pe_kernel,
        out_shape=jax.ShapeDtypeStruct((B, T, D), dtype),
        grid=grid,
        in_specs=[
            pl.BlockSpec((tb, tt, td), lambda t, d, b: (b, t, d)),   # x
            pl.BlockSpec((1, tt, td), lambda t, d, b: (0, t, d)),    # pe (reused across batch)
        ],
        out_specs=pl.BlockSpec((tb, tt, td), lambda t, d, b: (b, t, d)),
        compiler_params=pltpu.CompilerParams(
            dimension_semantics=("parallel", "parallel", "parallel"),  # pure elementwise
            vmem_limit_bytes=_VMEM_LIMIT_BYTES,
        ),
    )(x, pe3)
    return out


if __name__ == "__main__":
    key = jax.random.PRNGKey(0)
    max_len = 640

    # Check 1: small shapes consistent with the module forward (batch, seq, d_model).
    B, T, D = 2, 8, 32
    k1, k2 = jax.random.split(key)
    x_small = jax.random.normal(k1, (B, T, D), dtype=jnp.float32)
    pe_small = make_positional_encoding(D, max_len)
    out_small = jax.block_until_ready(scaled_positional_encoding(x_small, pe_small))
    ref_small = x_small + pe_small[:T, :][None, :, :]
    assert out_small.shape == (B, T, D)
    assert jnp.allclose(out_small, ref_small, atol=1e-6), "mismatch vs reference (small)"

    # Check 2: model-sized d_model with odd batch -> multi-block grid + pe reuse across batch.
    B2, T2, D2 = 3, 160, 512
    x_big = jax.random.normal(k2, (B2, T2, D2), dtype=jnp.float32)
    pe_big = make_positional_encoding(D2, max_len)
    pe_big_prepared = prepare_pe(pe_big, T2, jnp.float32)   # hoisted/cached prep path
    out_big = jax.block_until_ready(scaled_positional_encoding(x_big, pe_big_prepared))
    ref_big = x_big + pe_big[:T2, :][None, :, :]
    assert out_big.shape == (B2, T2, D2)
    assert jnp.allclose(out_big, ref_big, atol=1e-6), "mismatch vs reference (big)"

    print("KERNEL_OK")
</pallas_src>

<mosaic_0001>
module attributes {stable_mosaic.version = 11 : i64} {
  func.func @_add_pe_kernel(%arg0: i32, %arg1: i32, %arg2: i32, %arg3: memref<2x8x32xf32, #tpu.memory_space<vmem>>, %arg4: memref<1x8x32xf32, #tpu.memory_space<vmem>>, %arg5: memref<2x8x32xf32, #tpu.memory_space<vmem>>) attributes {dimension_semantics = [#tpu.dimension_semantics<parallel>, #tpu.dimension_semantics<parallel>, #tpu.dimension_semantics<parallel>], iteration_bounds = array<i64: 1, 1, 1>, scalar_prefetch = 0 : i64, scratch_operands = 0 : i64, tpu.core_type = #tpu.core_type<tc>, window_params = [{transform_indices = @transform_0, window_bounds = array<i64: 2, 8, 32>}, {transform_indices = @transform_1, window_bounds = array<i64: 1, 8, 32>}, {transform_indices = @transform_2, window_bounds = array<i64: 2, 8, 32>}]} {
    %c0 = arith.constant 0 : index
    %c0_0 = arith.constant 0 : index
    %c0_1 = arith.constant 0 : index
    %0 = vector.load %arg3[%c0, %c0_0, %c0_1] : memref<2x8x32xf32, #tpu.memory_space<vmem>>, vector<2x8x32xf32>
    %c0_2 = arith.constant 0 : index
    %c0_3 = arith.constant 0 : index
    %c0_4 = arith.constant 0 : index
    %1 = vector.load %arg4[%c0_2, %c0_3, %c0_4] : memref<1x8x32xf32, #tpu.memory_space<vmem>>, vector<1x8x32xf32>
    %2 = vector.broadcast %1 : vector<1x8x32xf32> to vector<2x8x32xf32>
    %3 = arith.addf %0, %2 : vector<2x8x32xf32>
    %c0_5 = arith.constant 0 : index
    %c0_6 = arith.constant 0 : index
    %c0_7 = arith.constant 0 : index
    %4 = vector.load %arg5[%c0_5, %c0_6, %c0_7] : memref<2x8x32xf32, #tpu.memory_space<vmem>>, vector<2x8x32xf32>
    tpu.vector_store %arg5[%c0_5, %c0_6, %c0_7], %3 {strides = array<i32>} : memref<2x8x32xf32, #tpu.memory_space<vmem>>, vector<2x8x32xf32>,
    return
  }
  func.func @transform_0(%arg0: i32, %arg1: i32, %arg2: i32) -> (i32, i32, i32) {
    %c0_i32 = arith.constant 0 : i32
    return %arg2, %arg0, %arg1 : i32, i32, i32
  }
  func.func @transform_1(%arg0: i32, %arg1: i32, %arg2: i32) -> (i32, i32, i32) {
    %c0_i32 = arith.constant 0 : i32
    %c0_i32_0 = arith.constant 0 : i32
    return %c0_i32, %arg0, %arg1 : i32, i32, i32
  }
  func.func @transform_2(%arg0: i32, %arg1: i32, %arg2: i32) -> (i32, i32, i32) {
    %c0_i32 = arith.constant 0 : i32
    return %arg2, %arg0, %arg1 : i32, i32, i32
  }
}

</mosaic_0001>

<llo_original>
// kernel: tpu_custom_call.1
$region0: #{tpu_custom_call.1}
  #allocation0 [shape = 'u32[]', space=smem, size = 0x4, offset = 0x4, fixed_abs, tag = 'smem constant byte address 0x4 - core index']
  #allocation1 [shape = 'u32[144,128]{1,0:T(1,128)}', space=vmem, size = 0x12000, scoped, tag = 'internal scratch']
  %s0 = inlined_call_operand.hbm [shape: f32[2,8,32], index: 0, kind: input, shape index: {}]
  %s1 = inlined_call_operand.hbm [shape: f32[1,8,32], index: 1, kind: input, shape index: {}]
  %s2 = inlined_call_operand.hbm [shape: f32[2,8,32], index: 2, kind: output, shape index: {}]
  %s3 = sld [smem:[#allocation0]]
  $region26: #{tpu_custom_call.1} parent=0
    _
  %s5 = ssub.s32 1, %s3
  %s6 = scalar_select 0, %s5, %s3
  $region1: #{tpu_custom_call.1} parent=0
    #allocation2 [shape = 'u8[8192]{0}', space=vmem, size = 0x2000, scoped, tag = 'input window, operand 0, single buffered']
    #allocation3 [shape = 's32[1]{0}', space=sflag, size = 0x4, scoped, tag = 'scoped memory for tpu_custom_call.1']
    #allocation4 [shape = 's32[1]{0}', space=sflag, size = 0x4, scoped, tag = 'scoped memory for tpu_custom_call.1']
    #allocation5 [shape = 'u8[4096]{0}', space=vmem, size = 0x1000, scoped, tag = 'input window, operand 1, single buffered']
    #allocation6 [shape = 's32[1]{0}', space=sflag, size = 0x4, scoped, tag = 'scoped memory for tpu_custom_call.1']
    #allocation7 [shape = 'u8[8192]{0}', space=vmem, size = 0x2000, scoped, tag = 'output window, operand 0, single buffered']
    %7 = vsyncpa [#allocation3], 0
    %8 = vsyncpa [#allocation6], 0
    %9 = vsyncpa [#allocation4], 0
    // Predicated region
    $region2: #{tpu_custom_call.1} parent=1 // pred_check
      _
    $region3: #{tpu_custom_call.1} parent=1 // pred_check_branch
      %11 = sbr.rel (0) target = $region5
    $region4: #{tpu_custom_call.1} parent=1 // pred_region
      %s13 = ssub.s32 256, 256
      %14 = vsyncadd [#allocation3], %s13
      %s15 = sshll.u32 [#allocation2], 4
      %s16 = int_to_ptr.vmem [resolvable:$true] %s15
      %21 = dma.hbm_to_vmem [thread:$0]  %s0, 256, %s16, [#allocation3], 128, 128, 8
    $region5: #{tpu_custom_call.1} parent=1 // pred_fallthru
      _
    // Predicated region
    $region6: #{tpu_custom_call.1} parent=1 // pred_check
      _
    $region7: #{tpu_custom_call.1} parent=1 // pred_check_branch
      %23 = sbr.rel (0) target = $region9
    $region8: #{tpu_custom_call.1} parent=1 // pred_region
      %s25 = ssub.s32 128, 128
      %26 = vsyncadd [#allocation6], %s25
      %s28 = sshll.u32 [#allocation5], 4
      %s29 = int_to_ptr.vmem [resolvable:$true] %s28
      %31 = dma.hbm_to_vmem [thread:$0]  %s1, 128, %s29, [#allocation6]
    $region9: #{tpu_custom_call.1} parent=1 // pred_fallthru
      _
    // Predicated region
    $region10: #{tpu_custom_call.1} parent=1 // pred_check
      _
    $region11: #{tpu_custom_call.1} parent=1 // pred_check_branch
      %33 = sbr.rel (0) target = $region13
    $region12: #{tpu_custom_call.1} parent=1 // pred_region
      %34 = dma.done [#allocation3], 256
    $region13: #{tpu_custom_call.1} parent=1 // pred_fallthru
      _
    // Predicated region
    $region14: #{tpu_custom_call.1} parent=1 // pred_check
      _
    $region15: #{tpu_custom_call.1} parent=1 // pred_check_branch
      %36 = sbr.rel (0) target = $region17
    $region16: #{tpu_custom_call.1} parent=1 // pred_region
      %37 = dma.done [#allocation6], 128
    $region17: #{tpu_custom_call.1} parent=1 // pred_fallthru
      _
    %v38 = vld [vmem:[#allocation2] sm:$0xff]
    %v39 = vld [vmem:[#allocation2 + $0x8] sm:$0xff]
    %v40 = vld [vmem:[#allocation5] sm:$0xff]
    %v41 = vadd.f32 %v38, %v40
    %v42 = vadd.f32 %v39, %v40
    %vm43 = vcmask 261120
    %44 = vst.msk [vmem:[#allocation7] sm:$0xff] %vm43, %v41
    %45 = vst.msk [vmem:[#allocation7 + $0x8] sm:$0xff] %vm43, %v42
    // Predicated region
    $region18: #{tpu_custom_call.1} parent=1 // pred_check
      _
    $region19: #{tpu_custom_call.1} parent=1 // pred_check_branch
      %47 = sbr.rel (0) target = $region21
    $region20: #{tpu_custom_call.1} parent=1 // pred_region
      %s49 = ssub.s32 256, 256
      %50 = vsyncadd [#allocation4], %s49
      %s51 = sshll.u32 [#allocation7], 4
      %s52 = int_to_ptr.vmem [resolvable:$true] %s51
      %57 = dma.vmem_to_hbm [thread:$0]  %s52, 256, %s2, [#allocation4], 128, 128, 8
    $region21: #{tpu_custom_call.1} parent=1 // pred_fallthru
      _
    // Predicated region
    $region22: #{tpu_custom_call.1} parent=1 // pred_check
      _
    $region23: #{tpu_custom_call.1} parent=1 // pred_check_branch
      %59 = sbr.rel (0) target = $region25
    $region24: #{tpu_custom_call.1} parent=1 // pred_region
      %60 = dma.done [#allocation4], 256
    $region25: #{tpu_custom_call.1} parent=1 // pred_fallthru
      _
    %61 = vsyncpa [#allocation3], 1
    %62 = vsyncpa [#allocation6], 1
    %63 = vsyncpa [#allocation4], 1

</llo_original>
